<compile_context>
chip_gen: v7x
topology: tpu7x:2x2x1
jax: 0.10.0
libtpu: 0.0.40
codegen_flags: <defaults>
</compile_context>

<pallas_src>
import functools

import jax
import jax.numpy as jnp
from jax import lax
from jax.experimental import pallas as pl
from jax.experimental.pallas import tpu as pltpu

LEAKY_SLOPE = 0.01      # nn.LeakyReLU() default negative_slope
LN_EPS = 1e-5           # nn.LayerNorm default eps
_LANE = 128
_MIB = 1024 * 1024

# Flipped off on first use if this jax build rejects pl.Buffered(1) block specs.
_SINGLE_BUFFER_OK = [True]


def _round_up(x, m):
    return (x + m - 1) // m * m


def _vmem_capacity_bytes():
    try:
        return int(pltpu.get_tpu_info().vmem_capacity_bytes)
    except Exception:
        return 64 * _MIB        # conservative (v7x-sized) fallback


def _epilogue(y, s, *, use_norm, out_size, n_pad):
    """y: [TB, out_p] f32 pre-activation; s: [3, out_p] f32 = (bias, gamma, beta)."""
    y = y + s[0:1, :]                                   # bias, broadcast over rows
    y = jnp.where(y > 0, y, LEAKY_SLOPE * y)            # LeakyReLU (f32 VPU)
    if use_norm:
        inv_n = 1.0 / float(out_size)
        # Padded columns are exactly 0 (zero weight cols + zero bias -> LeakyReLU(0)=0),
        # so the sums divided by the REAL out_size give the unpadded statistics.
        mean = jnp.sum(y, axis=-1, keepdims=True) * inv_n
        yc = y - mean
        if n_pad:
            lane = lax.broadcasted_iota(jnp.int32, (1, y.shape[-1]), 1)
            yc = jnp.where(lane < out_size, yc, 0.0)    # mask padded lanes for variance
        var = jnp.sum(yc * yc, axis=-1, keepdims=True) * inv_n
        scale = lax.rsqrt(var + LN_EPS) * s[1:2, :]     # rsqrt -> EUP slot
        y = yc * scale + s[2:3, :]
    return y


def _relu_layer_kernel(x_ref, w_ref, s_ref, o_ref, *scratch, use_norm, out_size,
                       n_pad, n_k):
    # x_ref: [TB, tk] f32      w_ref: [tk, out_p] compute dtype (bf16/f32)
    # s_ref: [3, out_p] f32    o_ref: [TB, out_p] out dtype
    x = x_ref[...].astype(w_ref.dtype)        # in-kernel cast, hidden under the MXU
    part = jnp.dot(x, w_ref[...], preferred_element_type=jnp.float32)

    if n_k == 1:                               # weight resident, no K accumulation
        o_ref[...] = _epilogue(part, s_ref[...], use_norm=use_norm,
                               out_size=out_size, n_pad=n_pad).astype(o_ref.dtype)
        return

    acc_ref, = scratch
    k = pl.program_id(1)

    @pl.when(k == 0)
    def _():
        acc_ref[...] = jnp.zeros_like(acc_ref)

    acc_ref[...] += part

    @pl.when(k == n_k - 1)
    def _():
        o_ref[...] = _epilogue(acc_ref[...], s_ref[...], use_norm=use_norm,
                               out_size=out_size, n_pad=n_pad).astype(o_ref.dtype)


def prepare_params(w, b, gamma=None, beta=None, *, compute_dtype=jnp.bfloat16):
    """One-time weight prep (hoisted out of the per-call forward path).

    w: [out_size, in_size] (PyTorch nn.Linear layout); b/gamma/beta: [out_size].
    Returns the pre-transposed, lane-padded, pre-cast weight plus the packed
    (bias, gamma, beta) f32 slab the kernel epilogue consumes.
    """
    out_size, in_size = w.shape
    out_p = _round_up(out_size, _LANE)
    n_pad = out_p - out_size
    if gamma is None:
        gamma = jnp.ones((out_size,), jnp.float32)
    if beta is None:
        beta = jnp.zeros((out_size,), jnp.float32)

    w_t = jnp.transpose(w).astype(compute_dtype)             # [in_size, out_size]
    b = b.astype(jnp.float32)
    gamma = gamma.astype(jnp.float32)
    beta = beta.astype(jnp.float32)
    if n_pad:
        # Zero weight columns + zero bias -> padded activations are exactly 0, which
        # keeps the LayerNorm statistics correct when divided by the real out_size.
        w_t = jnp.pad(w_t, ((0, 0), (0, n_pad)))
        b = jnp.pad(b, (0, n_pad))
        gamma = jnp.pad(gamma, (0, n_pad))
        beta = jnp.pad(beta, (0, n_pad))
    stats = jnp.stack([b, gamma, beta], axis=0)               # (3, out_p) f32
    w_t, stats = jax.block_until_ready((w_t, stats))
    return dict(w=w_t, stats=stats, in_size=in_size, out_size=out_size, out_p=out_p)


def relu_layer_forward(x, params, *, use_norm, out_dtype=None,
                       block_b=None, block_k=None):
    """x: [B, in_size] (native dtype, typically f32). Returns [B, out_size]."""
    B, in_size = x.shape
    assert in_size == params["in_size"]
    out_size, out_p = params["out_size"], params["out_p"]
    w_t, stats = params["w"], params["stats"]
    n_pad = out_p - out_size
    out_dtype = x.dtype if out_dtype is None else jnp.dtype(out_dtype)
    cbytes = jnp.dtype(w_t.dtype).itemsize
    xbytes = jnp.dtype(x.dtype).itemsize
    obytes = jnp.dtype(out_dtype).itemsize

    budget = int(_vmem_capacity_bytes() * 0.85)   # per-generation, with headroom

    # ---- K tile: keep the whole weight resident when it fits, otherwise stream it.
    if block_k is not None:
        tk = block_k
        assert in_size % tk == 0 and (tk == in_size or tk % _LANE == 0)
    else:
        tk = in_size
        # Halve tk (staying a multiple of 128 that divides in_size) while a resident
        # weight slab would eat more than ~1/3 of the VMEM budget.
        while tk % 256 == 0 and tk * out_p * cbytes > budget // 3:
            tk //= 2
    grid_k = in_size // tk

    # ---- Batch tile: as large as VMEM allows; keep >= 2 grid steps when B allows so
    # both v7x TensorCores get work on the "parallel" axis.
    sub = max(8, 32 // obytes)                    # sublane granularity of the out tile
    if block_b is None:
        block_b = min(1024, _round_up(B, sub))
        if B > sub:
            block_b = min(block_b, _round_up(pl.cdiv(B, 2), sub))
    block_b = max(sub, _round_up(block_b, sub))

    def vmem_est(bb):
        w_bufs = 1 if grid_k == 1 else 2          # resident vs. streamed weight
        return (w_bufs * tk * out_p * cbytes
                + 2 * bb * tk * xbytes            # x tiles (double-buffered)
                + 2 * bb * out_p * obytes         # out tiles
                + (bb * out_p * 4 if grid_k > 1 else 0)   # f32 accumulator
                + 2 * bb * out_p * 4              # f32 epilogue temporaries
                + 2 * 3 * out_p * 4)              # packed bias/gamma/beta

    while block_b > sub and vmem_est(block_b) > budget:
        block_b = _round_up(block_b // 2, sub)

    grid = (pl.cdiv(B, block_b), grid_k)
    vmem_limit = int(min(max(2 * vmem_est(block_b), 32 * _MIB), budget))

    kernel = functools.partial(_relu_layer_kernel, use_norm=use_norm,
                               out_size=out_size, n_pad=n_pad, n_k=grid_k)
    scratch = [pltpu.VMEM((block_b, out_p), jnp.float32)] if grid_k > 1 else []

    def call(single_buffer):
        def inv_spec(shape, imap):
            if single_buffer:
                return pl.BlockSpec(shape, imap, pipeline_mode=pl.Buffered(1))
            return pl.BlockSpec(shape, imap)

        if grid_k == 1:    # grid-invariant weight -> single resident buffer
            w_spec = inv_spec((tk, out_p), lambda i, k: (0, 0))
        else:              # weight streams over K -> default double-buffering
            w_spec = pl.BlockSpec((tk, out_p), lambda i, k: (k, 0))

        return pl.pallas_call(
            kernel,
            out_shape=jax.ShapeDtypeStruct((B, out_p), out_dtype),
            grid_spec=pltpu.PrefetchScalarGridSpec(
                num_scalar_prefetch=0,
                grid=grid,
                in_specs=[
                    pl.BlockSpec((block_b, tk), lambda i, k: (i, k)),
                    w_spec,
                    inv_spec((3, out_p), lambda i, k: (0, 0)),
                ],
                out_specs=pl.BlockSpec((block_b, out_p), lambda i, k: (i, 0)),
                scratch_shapes=scratch,
            ),
            compiler_params=pltpu.CompilerParams(
                dimension_semantics=("parallel", "arbitrary"),
                vmem_limit_bytes=vmem_limit),
        )(x, w_t, stats)

    if _SINGLE_BUFFER_OK[0]:
        try:
            out = call(True)
        except Exception:      # pl.Buffered(1) unsupported on this build -> default
            _SINGLE_BUFFER_OK[0] = False
            out = call(False)
    else:
        out = call(False)

    return out[:, :out_size] if n_pad else out


def init_params(key, in_size, out_size):
    # Deterministic init mimicking nn.Linear defaults (kaiming-uniform-ish bound).
    kw, kb = jax.random.split(key)
    bound = 1.0 / jnp.sqrt(jnp.float32(in_size))
    w = jax.random.uniform(kw, (out_size, in_size), jnp.float32, -bound, bound)
    b = jax.random.uniform(kb, (out_size,), jnp.float32, -bound, bound)
    gamma = jnp.ones((out_size,), jnp.float32)    # nn.LayerNorm weight init
    beta = jnp.zeros((out_size,), jnp.float32)    # nn.LayerNorm bias init
    return w, b, gamma, beta


def reference_forward(x, w, b, gamma, beta, use_norm):
    y = x @ w.T + b
    y = jnp.where(y > 0, y, LEAKY_SLOPE * y)
    if use_norm:
        mean = jnp.mean(y, axis=-1, keepdims=True)
        var = jnp.mean((y - mean) ** 2, axis=-1, keepdims=True)
        y = (y - mean) / jnp.sqrt(var + LN_EPS) * gamma + beta
    return y


if __name__ == "__main__":
    key = jax.random.PRNGKey(0)
    k_x1, k_p1, k_x2, k_p2 = jax.random.split(key, 4)
    ok = True

    # Case 1: small layer (out_size not lane-aligned) with a ragged batch so the
    # last block is partial (no wrapper-side padding / row slicing).
    B1, in1, out1 = 12, 32, 64
    x1 = jax.random.normal(k_x1, (B1, in1), jnp.float32)
    w1, b1, g1, be1 = init_params(k_p1, in1, out1)
    p1_f32 = prepare_params(w1, b1, g1, be1, compute_dtype=jnp.float32)
    p1_bf16 = prepare_params(w1, b1, g1, be1, compute_dtype=jnp.bfloat16)  # default path
    for use_norm in (False, True):
        ref = reference_forward(x1, w1, b1, g1, be1, use_norm)
        out = jax.block_until_ready(relu_layer_forward(x1, p1_f32, use_norm=use_norm))
        ok &= out.shape == (B1, out1) and float(jnp.max(jnp.abs(out - ref))) < 1e-4
        out_bf = jax.block_until_ready(relu_layer_forward(x1, p1_bf16, use_norm=use_norm))
        ok &= out_bf.shape == (B1, out1) and float(jnp.max(jnp.abs(out_bf - ref))) < 5e-2

    # Case 2: lane-aligned layer; force the K-split accumulator path, then the
    # bf16-output writeback option with automatic tiling.
    B2, in2, out2 = 16, 256, 128
    x2 = jax.random.normal(k_x2, (B2, in2), jnp.float32)
    w2, b2, g2, be2 = init_params(k_p2, in2, out2)
    p2 = prepare_params(w2, b2, g2, be2, compute_dtype=jnp.bfloat16)
    ref2 = reference_forward(x2, w2, b2, g2, be2, True)

    out_k = jax.block_until_ready(
        relu_layer_forward(x2, p2, use_norm=True, block_b=8, block_k=128))
    ok &= out_k.shape == (B2, out2) and float(jnp.max(jnp.abs(out_k - ref2))) < 5e-2

    out_bf16 = jax.block_until_ready(
        relu_layer_forward(x2, p2, use_norm=True, out_dtype=jnp.bfloat16))
    ok &= (out_bf16.dtype == jnp.bfloat16 and out_bf16.shape == (B2, out2)
           and float(jnp.max(jnp.abs(out_bf16.astype(jnp.float32) - ref2))) < 1e-1)

    print("KERNEL_OK" if ok else "KERNEL_MISMATCH")
</pallas_src>

<mosaic_0001>
module attributes {stable_mosaic.version = 11 : i64} {
  func.func @_relu_layer_kernel(%arg0: i32, %arg1: i32, %arg2: memref<8x32xf32, #tpu.memory_space<vmem>>, %arg3: memref<32x128xf32, #tpu.memory_space<vmem>>, %arg4: memref<3x128xf32, #tpu.memory_space<vmem>>, %arg5: memref<8x128xf32, #tpu.memory_space<vmem>>) attributes {dimension_semantics = [#tpu.dimension_semantics<parallel>, #tpu.dimension_semantics<arbitrary>], iteration_bounds = array<i64: 2, 1>, scalar_prefetch = 0 : i64, scratch_operands = 0 : i64, tpu.core_type = #tpu.core_type<tc>, window_params = [{transform_indices = @transform_0, window_bounds = array<i64: 8, 32>}, {pipeline_mode = #tpu.pipeline_mode<synchronous>, transform_indices = @transform_1, window_bounds = array<i64: 32, 128>}, {pipeline_mode = #tpu.pipeline_mode<synchronous>, transform_indices = @transform_2, window_bounds = array<i64: 3, 128>}, {transform_indices = @transform_3, window_bounds = array<i64: 8, 128>}]} {
    %c0 = arith.constant 0 : index
    %c0_0 = arith.constant 0 : index
    %0 = vector.load %arg2[%c0, %c0_0] : memref<8x32xf32, #tpu.memory_space<vmem>>, vector<8x32xf32>
    %c0_1 = arith.constant 0 : index
    %c0_2 = arith.constant 0 : index
    %1 = vector.load %arg3[%c0_1, %c0_2] : memref<32x128xf32, #tpu.memory_space<vmem>>, vector<32x128xf32>
    %cst = arith.constant dense<0.000000e+00> : vector<8x128xf32>
    %2 = tpu.matmul %0, %1, %cst {dimension_numbers = #tpu.dot_dimension_numbers<[1], [0], [0], [1], [0, 0, 1, 1], [], []>} : vector<8x32xf32>, vector<32x128xf32>, vector<8x128xf32> -> vector<8x128xf32>
    %c0_3 = arith.constant 0 : index
    %c0_4 = arith.constant 0 : index
    %3 = vector.load %arg4[%c0_3, %c0_4] : memref<3x128xf32, #tpu.memory_space<vmem>>, vector<3x128xf32>
    %4 = vector.extract_strided_slice %3 {offsets = [0, 0], sizes = [1, 128], strides = [1, 1]} : vector<3x128xf32> to vector<1x128xf32>
    %5 = vector.broadcast %4 : vector<1x128xf32> to vector<8x128xf32>
    %6 = arith.addf %2, %5 : vector<8x128xf32>
    %cst_5 = arith.constant 0.000000e+00 : f32
    %7 = vector.broadcast %cst_5 : f32 to vector<8x128xf32>
    %8 = arith.cmpf ogt, %6, %7 : vector<8x128xf32>
    %cst_6 = arith.constant 0.00999999977 : f32
    %9 = vector.broadcast %cst_6 : f32 to vector<8x128xf32>
    %10 = arith.mulf %9, %6 : vector<8x128xf32>
    %11 = arith.select %8, %6, %10 : vector<8x128xi1>, vector<8x128xf32>
    %c0_7 = arith.constant 0 : index
    %c0_8 = arith.constant 0 : index
    %12 = vector.load %arg5[%c0_7, %c0_8] : memref<8x128xf32, #tpu.memory_space<vmem>>, vector<8x128xf32>
    tpu.vector_store %arg5[%c0_7, %c0_8], %11 {strides = array<i32>} : memref<8x128xf32, #tpu.memory_space<vmem>>, vector<8x128xf32>,
    return
  }
  func.func @transform_0(%arg0: i32, %arg1: i32) -> (i32, i32) {
    %c0_i32 = arith.constant 0 : i32
    return %arg0, %arg1 : i32, i32
  }
  func.func @transform_1(%arg0: i32, %arg1: i32) -> (i32, i32) {
    %c0_i32 = arith.constant 0 : i32
    %c0_i32_0 = arith.constant 0 : i32
    %c0_i32_1 = arith.constant 0 : i32
    return %c0_i32, %c0_i32_0 : i32, i32
  }
  func.func @transform_2(%arg0: i32, %arg1: i32) -> (i32, i32) {
    %c0_i32 = arith.constant 0 : i32
    %c0_i32_0 = arith.constant 0 : i32
    %c0_i32_1 = arith.constant 0 : i32
    return %c0_i32, %c0_i32_0 : i32, i32
  }
  func.func @transform_3(%arg0: i32, %arg1: i32) -> (i32, i32) {
    %c0_i32 = arith.constant 0 : i32
    %c0_i32_0 = arith.constant 0 : i32
    return %arg0, %c0_i32 : i32, i32
  }
}

module attributes {stable_mosaic.version = 11 : i64} {
  func.func @_relu_layer_kernel(%arg0: i32, %arg1: i32, %arg2: memref<8x32xf32, #tpu.memory_space<vmem>>, %arg3: memref<32x128xf32, #tpu.memory_space<vmem>>, %arg4: memref<3x128xf32, #tpu.memory_space<vmem>>, %arg5: memref<8x128xf32, #tpu.memory_space<vmem>>) attributes {dimension_semantics = [#tpu.dimension_semantics<parallel>, #tpu.dimension_semantics<arbitrary>], iteration_bounds = array<i64: 2, 1>, scalar_prefetch = 0 : i64, scratch_operands = 0 : i64, tpu.core_type = #tpu.core_type<tc>, window_params = [{transform_indices = @transform_0, window_bounds = array<i64: 8, 32>}, {pipeline_mode = #tpu.pipeline_mode<synchronous>, transform_indices = @transform_1, window_bounds = array<i64: 32, 128>}, {pipeline_mode = #tpu.pipeline_mode<synchronous>, transform_indices = @transform_2, window_bounds = array<i64: 3, 128>}, {transform_indices = @transform_3, window_bounds = array<i64: 8, 128>}]} {
    %c0 = arith.constant 0 : index
    %c0_0 = arith.constant 0 : index
    %0 = vector.load %arg2[%c0, %c0_0] : memref<8x32xf32, #tpu.memory_space<vmem>>, vector<8x32xf32>
    %c0_1 = arith.constant 0 : index
    %c0_2 = arith.constant 0 : index
    %1 = vector.load %arg3[%c0_1, %c0_2] : memref<32x128xf32, #tpu.memory_space<vmem>>, vector<32x128xf32>
    %cst = arith.constant dense<0.000000e+00> : vector<8x128xf32>
    %2 = tpu.matmul %0, %1, %cst {dimension_numbers = #tpu.dot_dimension_numbers<[1], [0], [0], [1], [0, 0, 1, 1], [], []>} : vector<8x32xf32>, vector<32x128xf32>, vector<8x128xf32> -> vector<8x128xf32>
    %c0_3 = arith.constant 0 : index
    %c0_4 = arith.constant 0 : index
    %3 = vector.load %arg4[%c0_3, %c0_4] : memref<3x128xf32, #tpu.memory_space<vmem>>, vector<3x128xf32>
    %4 = vector.extract_strided_slice %3 {offsets = [0, 0], sizes = [1, 128], strides = [1, 1]} : vector<3x128xf32> to vector<1x128xf32>
    %5 = vector.broadcast %4 : vector<1x128xf32> to vector<8x128xf32>
    %6 = arith.addf %2, %5 : vector<8x128xf32>
    %cst_5 = arith.constant 0.000000e+00 : f32
    %7 = vector.broadcast %cst_5 : f32 to vector<8x128xf32>
    %8 = arith.cmpf ogt, %6, %7 : vector<8x128xf32>
    %cst_6 = arith.constant 0.00999999977 : f32
    %9 = vector.broadcast %cst_6 : f32 to vector<8x128xf32>
    %10 = arith.mulf %9, %6 : vector<8x128xf32>
    %11 = arith.select %8, %6, %10 : vector<8x128xi1>, vector<8x128xf32>
    %c0_7 = arith.constant 0 : index
    %c0_8 = arith.constant 0 : index
    %12 = vector.load %arg5[%c0_7, %c0_8] : memref<8x128xf32, #tpu.memory_space<vmem>>, vector<8x128xf32>
    tpu.vector_store %arg5[%c0_7, %c0_8], %11 {strides = array<i32>} : memref<8x128xf32, #tpu.memory_space<vmem>>, vector<8x128xf32>,
    return
  }
  func.func @transform_0(%arg0: i32, %arg1: i32) -> (i32, i32) {
    %c0_i32 = arith.constant 0 : i32
    return %arg0, %arg1 : i32, i32
  }
  func.func @transform_1(%arg0: i32, %arg1: i32) -> (i32, i32) {
    %c0_i32 = arith.constant 0 : i32
    %c0_i32_0 = arith.constant 0 : i32
    %c0_i32_1 = arith.constant 0 : i32
    return %c0_i32, %c0_i32_0 : i32, i32
  }
  func.func @transform_2(%arg0: i32, %arg1: i32) -> (i32, i32) {
    %c0_i32 = arith.constant 0 : i32
    %c0_i32_0 = arith.constant 0 : i32
    %c0_i32_1 = arith.constant 0 : i32
    return %c0_i32, %c0_i32_0 : i32, i32
  }
  func.func @transform_3(%arg0: i32, %arg1: i32) -> (i32, i32) {
    %c0_i32 = arith.constant 0 : i32
    %c0_i32_0 = arith.constant 0 : i32
    return %arg0, %c0_i32 : i32, i32
  }
}

</mosaic_0001>

<llo_original>
// kernel: tpu_custom_call.1
$region0: #{tpu_custom_call.1}
  #allocation0 [shape = 'u32[]', space=smem, size = 0x4, offset = 0x4, fixed_abs, tag = 'smem constant byte address 0x4 - core index']
  #allocation1 [shape = 'u32[144,128]{1,0:T(1,128)}', space=vmem, size = 0x12000, scoped, tag = 'internal scratch']
  %s0 = inlined_call_operand.hbm [shape: f32[12,32], index: 0, kind: input, shape index: {}]
  %s1 = inlined_call_operand.hbm [shape: f32[32,128], index: 1, kind: input, shape index: {}]
  %s2 = inlined_call_operand.vmem [shape: f32[3,128], index: 2, kind: input, shape index: {}]
  %s3 = inlined_call_operand.hbm [shape: f32[12,128], index: 3, kind: output, shape index: {}]
  %s4 = sld [smem:[#allocation0]]
  $region53: #{tpu_custom_call.1} parent=0
    _
  %s6 = ssub.s32 1, %s4
  %s7 = scalar_select 0, %s6, %s4
  $region1: #{tpu_custom_call.1} parent=0
    #allocation2 [shape = 'u8[8192]{0}', space=vmem, size = 0x2000, scoped, tag = 'input window, operand 0']
    #allocation3 [shape = 's32[2]{0}', space=sflag, size = 0x8, scoped, tag = 'scoped memory for tpu_custom_call.1']
    #allocation4 [shape = 's32[2]{0}', space=sflag, size = 0x8, scoped, tag = 'scoped memory for tpu_custom_call.1']
    #allocation5 [shape = 'u8[16384]{0}', space=vmem, size = 0x4000, scoped, tag = 'input window, operand 1, single buffered']
    #allocation6 [shape = 's32[1]{0}', space=sflag, size = 0x4, scoped, tag = 'scoped memory for tpu_custom_call.1']
    #allocation7 [shape = 'u8[8192]{0}', space=vmem, size = 0x2000, scoped, tag = 'output window, operand 0']
    %8 = vsyncpa [#allocation3], 0
    %s9 = scalar_lea.sflag [#allocation3], 1
    %10 = vsyncpa %s9, 0
    %11 = vsyncpa [#allocation6], 0
    %12 = vsyncpa [#allocation4], 0
    %s13 = scalar_lea.sflag [#allocation4], 1
    %14 = vsyncpa %s13, 0
    loop: start=0, step=1, limit=4
    $region2: #{tpu_custom_call.1} parent=1 // loop_pre_header
      _
    $region3: #{tpu_custom_call.1} parent=1 // loop_header
      %s16 = sphi 0, %s20
      %p17 = scmp.ge.s32.totalorder %s16, 4
      %s23 = sphi 0, %s35
      %s24 = sphi 0, %s31
      %s25 = sphi 0, %s23
      %s26 = sphi 0, %s24
      %s27 = sphi 0, %s25
      %s28 = sphi 0, %s26
      %s40 = sphi 0, %s42
      %s43 = sphi 0, %s40
      %s44 = sphi 0, %s43
      %s60 = sphi 0, %s44
      %s64 = sphi 0, %s64
      %s66 = sphi 0, %s64
      %s67 = sphi 0, %s66
      %s81 = sphi 0, %s67
      %s85 = sphi 0, %s85
      %s87 = sphi 0, %s85
      %s88 = sphi 0, %s87
      %s102 = sphi 0, %s88
      %s108 = sphi 0, %s110
      %s111 = sphi 0, %s108
      %s112 = sphi 0, %s111
      %s128 = sphi 0, %s112
    $region4: #{tpu_custom_call.1} parent=1 // loop_header_branch
      %19 = sbr.rel (%p17) target = $region8
    $region5: #{tpu_custom_call.1} parent=1 // loop_body
      %s21 = ssub.s32 %s16, 1
      %s22 = ssub.s32 %s16, 2
      %s29 = sadd.s32 1, %s24
      %p30 = scmp.ge.s32.totalorder %s29, 1
      %s31 = scalar_select %p30, 0, %s29
      %s32 = sadd.s32 1, %s23
      %s33 = scalar_select %p30, %s32, %s23
      %p34 = scmp.ge.s32.totalorder %s33, 2
      %s35 = scalar_select %p34, 0, %s33
      %s36 = ssub.s32 %s23, %s35
      %s37 = ssub.s32 %s24, %s31
      %s38 = sor.u32 %s36, %s37
      %p39 = scmp.eq.s32.totalorder %s38, 0
      %s41 = sadd.s32 %s40, 1
      %s42 = scalar_select %p39, %s40, %s41
      %p45 = pneg %p39
      %p46 = scmp.eq.s32.totalorder %s16, 1
      %p47 = por %p45, %p46
      %p48 = scmp.ne.s32.totalorder %s40, %s43
      %p49 = scmp.eq.s32.totalorder %s16, 0
      %p50 = por %p48, %p49
      %p51 = scmp.ne.s32.totalorder %s40, %s43
      %p52 = scmp.eq.s32.totalorder %s21, 1
      %p53 = por %p51, %p52
      %p54 = scmp.ne.s32.totalorder %s43, %s44
      %p55 = scmp.eq.s32.totalorder %s21, 0
      %p56 = por %p54, %p55
      %p57 = scmp.ne.s32.totalorder %s43, %s44
      %p58 = scmp.eq.s32.totalorder %s22, 1
      %p59 = por %p57, %p58
      %p61 = scmp.ne.s32.totalorder %s44, %s60
      %p62 = scmp.eq.s32.totalorder %s22, 0
      %p63 = por %p61, %p62
      %s65 = sadd.s32 %s64, 1
      %p68 = scmp.eq.s32.totalorder %s16, 1
      %p69 = scmp.ne.s32.totalorder %s64, %s66
      %p70 = scmp.eq.s32.totalorder %s16, 0
      %p71 = por %p69, %p70
      %p72 = scmp.ne.s32.totalorder %s64, %s66
      %p73 = scmp.eq.s32.totalorder %s21, 1
      %p74 = por %p72, %p73
      %p75 = scmp.ne.s32.totalorder %s66, %s67
      %p76 = scmp.eq.s32.totalorder %s21, 0
      %p77 = por %p75, %p76
      %p78 = scmp.ne.s32.totalorder %s66, %s67
      %p79 = scmp.eq.s32.totalorder %s22, 1
      %p80 = por %p78, %p79
      %p82 = scmp.ne.s32.totalorder %s67, %s81
      %p83 = scmp.eq.s32.totalorder %s22, 0
      %p84 = por %p82, %p83
      %s86 = sadd.s32 %s85, 1
      %p89 = scmp.eq.s32.totalorder %s16, 1
      %p90 = scmp.ne.s32.totalorder %s85, %s87
      %p91 = scmp.eq.s32.totalorder %s16, 0
      %p92 = por %p90, %p91
      %p93 = scmp.ne.s32.totalorder %s85, %s87
      %p94 = scmp.eq.s32.totalorder %s21, 1
      %p95 = por %p93, %p94
      %p96 = scmp.ne.s32.totalorder %s87, %s88
      %p97 = scmp.eq.s32.totalorder %s21, 0
      %p98 = por %p96, %p97
      %p99 = scmp.ne.s32.totalorder %s87, %s88
      %p100 = scmp.eq.s32.totalorder %s22, 1
      %p101 = por %p99, %p100
      %p103 = scmp.ne.s32.totalorder %s88, %s102
      %p104 = scmp.eq.s32.totalorder %s22, 0
      %p105 = por %p103, %p104
      %s106 = ssub.s32 %s23, %s35
      %p107 = scmp.eq.s32.totalorder %s106, 0
      %s109 = sadd.s32 %s108, 1
      %s110 = scalar_select %p107, %s108, %s109
      %p113 = pneg %p107
      %p114 = scmp.eq.s32.totalorder %s16, 1
      %p115 = por %p113, %p114
      %p116 = scmp.ne.s32.totalorder %s108, %s111
      %p117 = scmp.eq.s32.totalorder %s16, 0
      %p118 = por %p116, %p117
      %p119 = scmp.ne.s32.totalorder %s108, %s111
      %p120 = scmp.eq.s32.totalorder %s21, 1
      %p121 = por %p119, %p120
      %p122 = scmp.ne.s32.totalorder %s111, %s112
      %p123 = scmp.eq.s32.totalorder %s21, 0
      %p124 = por %p122, %p123
      %p125 = scmp.ne.s32.totalorder %s111, %s112
      %p126 = scmp.eq.s32.totalorder %s22, 1
      %p127 = por %p125, %p126
      %p129 = scmp.ne.s32.totalorder %s112, %s128
      %p130 = scmp.eq.s32.totalorder %s22, 0
      %p131 = por %p129, %p130
      %p132 = scmp.le.s32.totalorder 1, %s16
      %p133 = scmp.lt.s32.totalorder %s16, 3
      %p134 = pnand %p132, %p133
      %p135 = pneg %p134
      // Predicated region
      $region9: #{tpu_custom_call.1} parent=5 // pred_check
        _
      $region10: #{tpu_custom_call.1} parent=5 // pred_check_branch
        %137 = sbr.rel (%p134) target = $region12
      $region11: #{tpu_custom_call.1} parent=5 // pred_region
        %s138 = ssub.s32 %s16, 1
        // Predicated region
        $region13: #{tpu_custom_call.1} parent=11 // pred_check
          %p139 = pneg %p77
        $region14: #{tpu_custom_call.1} parent=11 // pred_check_branch
          %141 = sbr.rel (%p139) target = $region16
        $region15: #{tpu_custom_call.1} parent=11 // pred_region
          %s143 = ssub.s32 512, 512
          %144 = vsyncadd [#allocation6], %s143
          %s145 = sshll.u32 [#allocation5], 4
          %s146 = int_to_ptr.vmem [resolvable:$true] %s145
          %151 = dma.hbm_to_vmem [thread:$0]  %s1, 512, %s146, [#allocation6], 128, 128, 8
        $region16: #{tpu_custom_call.1} parent=11 // pred_fallthru
          _
        // Predicated region
        $region17: #{tpu_custom_call.1} parent=11 // pred_check
          %p152 = pneg %p98
        $region18: #{tpu_custom_call.1} parent=11 // pred_check_branch
          %154 = sbr.rel (%p152) target = $region20
        $region19: #{tpu_custom_call.1} parent=11 // pred_region
          _
        $region20: #{tpu_custom_call.1} parent=11 // pred_fallthru
          _
      $region12: #{tpu_custom_call.1} parent=5 // pred_fallthru
        _
      %p155 = scmp.lt.s32.totalorder %s16, 2
      // Predicated region
      $region21: #{tpu_custom_call.1} parent=5 // pred_check
        %p156 = pneg %p155
      $region22: #{tpu_custom_call.1} parent=5 // pred_check_branch
        %158 = sbr.rel (%p156) target = $region24
      $region23: #{tpu_custom_call.1} parent=5 // pred_region
        // Predicated region
        $region25: #{tpu_custom_call.1} parent=23 // pred_check
          %p159 = pneg %p50
        $region26: #{tpu_custom_call.1} parent=23 // pred_check_branch
          %161 = sbr.rel (%p159) target = $region28
        $region27: #{tpu_custom_call.1} parent=23 // pred_region
          %s162 = sand.u32 %s40, 1
          %s163 = scalar_lea.sflag [#allocation3], %s162
          %s164 = sand.u32 %s40, 1
          %s165 = smul.addr %s164, 8
          %s166 = scalar_lea.vmem [#allocation2], %s165
          %s168 = ssub.s32 128, 128
          %169 = vsyncadd %s163, %s168
          %s170 = sadd.s32 %s24, %s23
          %s171 = smul.addr %s170, 128
          %s172 = scalar_lea.hbm %s0, %s171
          %s174 = sshll.u32 %s166, 4
          %s175 = int_to_ptr.vmem [resolvable:$true] %s174
          %177 = dma.hbm_to_vmem [thread:$0]  %s172, 128, %s175, %s163
        $region28: #{tpu_custom_call.1} parent=23 // pred_fallthru
          _
      $region24: #{tpu_custom_call.1} parent=5 // pred_fallthru
        _
      %p178 = scmp.le.s32.totalorder 1, %s16
      %p179 = scmp.lt.s32.totalorder %s16, 3
      %p180 = pnand %p178, %p179
      %p181 = pneg %p180
      // Predicated region
      $region29: #{tpu_custom_call.1} parent=5 // pred_check
        _
      $region30: #{tpu_custom_call.1} parent=5 // pred_check_branch
        %183 = sbr.rel (%p180) target = $region32
      $region31: #{tpu_custom_call.1} parent=5 // pred_region
        %s184 = ssub.s32 %s16, 1
        %s185 = sand.u32 %s43, 1
        %s186 = scalar_lea.sflag [#allocation3], %s185
        %s187 = sand.u32 %s43, 1
        %s188 = smul.addr %s187, 8
        %s189 = scalar_lea.vmem [#allocation2], %s188
        // Predicated region
        $region33: #{tpu_custom_call.1} parent=31 // pred_check
          %p190 = pneg %p56
        $region34: #{tpu_custom_call.1} parent=31 // pred_check_branch
          %192 = sbr.rel (%p190) target = $region36
        $region35: #{tpu_custom_call.1} parent=31 // pred_region
          %193 = dma.done %s186, 128
        $region36: #{tpu_custom_call.1} parent=31 // pred_fallthru
          _
        // Predicated region
        $region37: #{tpu_custom_call.1} parent=31 // pred_check
          %p194 = pneg %p77
        $region38: #{tpu_custom_call.1} parent=31 // pred_check_branch
          %196 = sbr.rel (%p194) target = $region40
        $region39: #{tpu_custom_call.1} parent=31 // pred_region
          %197 = dma.done [#allocation6], 512
        $region40: #{tpu_custom_call.1} parent=31 // pred_fallthru
          _
        %s198 = sand.u32 %s43, 1
        %s199 = scalar_lea.sflag [#allocation3], %s198
        %s200 = sand.u32 %s43, 1
        %s201 = smul.addr %s200, 8
        %s202 = scalar_lea.vmem [#allocation2], %s201
        %p203 = pneg %p56
        %p204 = pneg %p53
        %p205 = pneg %p77
        %p206 = pneg %p74
        %p207 = pneg %p98
        %p208 = pneg %p95
        %p209 = pneg %p124
        %p210 = pneg %p121
        %s211 = sand.u32 %s111, 1
        %s212 = scalar_lea.sflag [#allocation4], %s211
        %s213 = sand.u32 %s111, 1
        %s214 = smul.addr %s213, 8
        %s215 = scalar_lea.vmem [#allocation7], %s214
        %v216 = vld [vmem:[%s189] sm:$0xff]
        %v217 = vld [vmem:[#allocation5] sm:$0xff]
        %v218 = vld [vmem:[#allocation5 + $0x8] sm:$0xff]
        %v219 = vld [vmem:[#allocation5 + $0x10] sm:$0xff]
        %v220 = vld [vmem:[#allocation5 + $0x18] sm:$0xff]
        %v221 = vld [vmem:[%s2] sm:$0x7]
        %v222 = vlaneseq
        %v223 = vshrl.u32 %v222, 7
        %v224 = vsub.s32 0, %v223
        %v225 = vrot.slane %v221, %v224
        %vm226 = vcmask 261120
        %v228 = vsel %vm226, %v216, 0
        %230 = vmatprep.subr.mxu0 0.0
        %231 = vmatpush1.msra.mxu0 %v217
        %232 = vmatprep.subr.mxu0 0.0
        %233 = vmatpush1.msra.mxu0 %v218
        %234 = vmatprep.subr.mxu0 0.0
        %235 = vmatpush1.msra.mxu0 %v219
        %236 = vmatprep.subr.mxu0 0.0
        %237 = vmatpush1.msra.mxu0 %v220
        %238 = vmatprep.subr.mxu0 0.0
        %239 = vmatpush1.msra.mxu0 0.0
        %240 = vmatprep.subr.mxu0 0.0
        %241 = vmatpush1.msra.mxu0 0.0
        %242 = vmatprep.subr.mxu0 0.0
        %243 = vmatpush1.msra.mxu0 0.0
        %244 = vmatprep.subr.mxu0 0.0
        %245 = vmatpush1.msra.mxu0 0.0
        %246 = vmatprep.subr.mxu0 0.0
        %247 = vmatpush1.msra.mxu0 0.0
        %248 = vmatprep.subr.mxu0 0.0
        %249 = vmatpush1.msra.mxu0 0.0
        %250 = vmatprep.subr.mxu0 0.0
        %251 = vmatpush1.msra.mxu0 0.0
        %252 = vmatprep.subr.mxu0 0.0
        %253 = vmatpush1.msra.mxu0 0.0
        %254 = vmatprep.subr.mxu0 0.0
        %255 = vmatpush1.msra.mxu0 0.0
        %256 = vmatprep.subr.mxu0 0.0
        %257 = vmatpush1.msra.mxu0 0.0
        %258 = vmatprep.subr.mxu0 0.0
        %259 = vmatpush1.msra.mxu0 0.0
        %260 = vmatprep.subr.mxu0 0.0
        %261 = vmatpush1.msra.mxu0 0.0
        %262 = vmatprep.subr.mxu0 0.0
        %263 = vmatpush1.msra.mxu0 0.0
        %264 = vmatprep.subr.mxu0 0.0
        %265 = vmatpush1.msra.mxu0 0.0
        %266 = vmatprep.subr.mxu0 0.0
        %267 = vmatpush1.msra.mxu0 0.0
        %268 = vmatprep.subr.mxu0 0.0
        %269 = vmatpush1.msra.mxu0 0.0
        %270 = vmatprep.subr.mxu0 0.0
        %271 = vmatpush1.msra.mxu0 0.0
        %272 = vmatprep.subr.mxu0 0.0
        %273 = vmatpush1.msra.mxu0 0.0
        %274 = vmatprep.subr.mxu0 0.0
        %275 = vmatpush1.msra.mxu0 0.0
        %276 = vmatprep.subr.mxu0 0.0
        %277 = vmatpush1.msra.mxu0 0.0
        %278 = vmatprep.subr.mxu0 0.0
        %279 = vmatpush1.msra.mxu0 0.0
        %280 = vmatprep.subr.mxu0 0.0
        %281 = vmatpush1.msra.mxu0 0.0
        %282 = vmatprep.subr.mxu0 0.0
        %283 = vmatpush1.msra.mxu0 0.0
        %284 = vmatprep.subr.mxu0 0.0
        %285 = vmatpush1.msra.mxu0 0.0
        %286 = vmatprep.subr.mxu0 0.0
        %287 = vmatpush1.msra.mxu0 0.0
        %288 = vmatprep.subr.mxu0 0.0
        %289 = vmatpush1.msra.mxu0 0.0
        %290 = vmatprep.subr.mxu0 0.0
        %291 = vmatpush1.msra.mxu0 0.0
        %292 = vmatprep.subr.mxu0 0.0
        %293 = vmatpush1.msra.mxu0 0.0
        %294 = vmatprep.mubr.f32.mxu0 0.0
        %295 = vmatmul.mubr.f32.gmra.mrb[0].mxu0 %v228
        %v296 = vpop.f32.mrb[0].mxu0
        %v297 = vadd.f32 %v225, %v296
        %v298 = vpop.f32.mrb[0].mxu0
        %299 = vdwg.mxu0
        %vm300 = vcmp.gt.f32.partialorder %v297, 0.0
        %v301 = vmul.f32 %v297, 0.01
        %v302 = vsel %vm300, %v297, %v301
        %303 = vst [vmem:[%s215] sm:$0xff] %v302
        %s304 = sand.u32 %s111, 1
        %s305 = scalar_lea.sflag [#allocation4], %s304
        %s306 = sand.u32 %s111, 1
        %s307 = smul.addr %s306, 8
        %s308 = scalar_lea.vmem [#allocation7], %s307
        // Predicated region
        $region41: #{tpu_custom_call.1} parent=31 // pred_check
          %p309 = pneg %p121
        $region42: #{tpu_custom_call.1} parent=31 // pred_check_branch
          %311 = sbr.rel (%p309) target = $region44
        $region43: #{tpu_custom_call.1} parent=31 // pred_region
          %s313 = ssub.s32 128, 128
          %314 = vsyncadd %s305, %s313
          %s315 = smul.addr %s25, 128
          %s316 = scalar_lea.hbm %s3, %s315
          %s318 = sshll.u32 %s308, 4
          %s319 = int_to_ptr.vmem [resolvable:$true] %s318
          %321 = dma.vmem_to_hbm [thread:$0]  %s319, 128, %s316, %s305
        $region44: #{tpu_custom_call.1} parent=31 // pred_fallthru
          _
      $region32: #{tpu_custom_call.1} parent=5 // pred_fallthru
        _
      %p322 = scmp.le.s32.totalorder 2, %s16
      // Predicated region
      $region45: #{tpu_custom_call.1} parent=5 // pred_check
        %p323 = pneg %p322
      $region46: #{tpu_custom_call.1} parent=5 // pred_check_branch
        %325 = sbr.rel (%p323) target = $region48
      $region47: #{tpu_custom_call.1} parent=5 // pred_region
        %s326 = ssub.s32 %s16, 2
        // Predicated region
        $region49: #{tpu_custom_call.1} parent=47 // pred_check
          %p327 = pneg %p127
        $region50: #{tpu_custom_call.1} parent=47 // pred_check_branch
          %329 = sbr.rel (%p327) target = $region52
        $region51: #{tpu_custom_call.1} parent=47 // pred_region
          %s330 = sand.u32 %s112, 1
          %s331 = scalar_lea.sflag [#allocation4], %s330
          %s332 = sand.u32 %s112, 1
          %s333 = smul.addr %s332, 8
          %s334 = scalar_lea.vmem [#allocation7], %s333
          %335 = dma.done %s331, 128
        $region52: #{tpu_custom_call.1} parent=47 // pred_fallthru
          _
      $region48: #{tpu_custom_call.1} parent=5 // pred_fallthru
        _
    $region6: #{tpu_custom_call.1} parent=1 // loop_footer
      %s20 = sadd.s32 1, %s16
    $region7: #{tpu_custom_call.1} parent=1 // loop_footer_branch
      %15 = sbr.rel target = $region3
    $region8: #{tpu_custom_call.1} parent=1 // loop_exit
      _
    %336 = vsyncpa [#allocation3], 1
    %s337 = scalar_lea.sflag [#allocation3], 1
    %338 = vsyncpa %s337, 1
    %339 = vsyncpa [#allocation6], 1
    %340 = vsyncpa [#allocation4], 1
    %s341 = scalar_lea.sflag [#allocation4], 1
    %342 = vsyncpa %s341, 1

// kernel: tpu_custom_call.1
$region0: #{tpu_custom_call.1}
  #allocation0 [shape = 'u32[]', space=smem, size = 0x4, offset = 0x4, fixed_abs, tag = 'smem constant byte address 0x4 - core index']
  #allocation1 [shape = 'u32[144,128]{1,0:T(1,128)}', space=vmem, size = 0x12000, scoped, tag = 'internal scratch']
  %s0 = inlined_call_operand.hbm [shape: f32[12,32], index: 0, kind: input, shape index: {}]
  %s1 = inlined_call_operand.hbm [shape: f32[32,128], index: 1, kind: input, shape index: {}]
  %s2 = inlined_call_operand.vmem [shape: f32[3,128], index: 2, kind: input, shape index: {}]
  %s3 = inlined_call_operand.hbm [shape: f32[12,128], index: 3, kind: output, shape index: {}]
  %s4 = sld [smem:[#allocation0]]
  $region53: #{tpu_custom_call.1} parent=0
    _
  %s6 = ssub.s32 1, %s4
  %s7 = scalar_select 0, %s6, %s4
  $region1: #{tpu_custom_call.1} parent=0
    #allocation2 [shape = 'u8[8192]{0}', space=vmem, size = 0x2000, scoped, tag = 'input window, operand 0']
    #allocation3 [shape = 's32[2]{0}', space=sflag, size = 0x8, scoped, tag = 'scoped memory for tpu_custom_call.1']
    #allocation4 [shape = 's32[2]{0}', space=sflag, size = 0x8, scoped, tag = 'scoped memory for tpu_custom_call.1']
    #allocation5 [shape = 'u8[16384]{0}', space=vmem, size = 0x4000, scoped, tag = 'input window, operand 1, single buffered']
    #allocation6 [shape = 's32[1]{0}', space=sflag, size = 0x4, scoped, tag = 'scoped memory for tpu_custom_call.1']
    #allocation7 [shape = 'u8[8192]{0}', space=vmem, size = 0x2000, scoped, tag = 'output window, operand 0']
    %8 = vsyncpa [#allocation3], 0
    %s9 = scalar_lea.sflag [#allocation3], 1
    %10 = vsyncpa %s9, 0
    %11 = vsyncpa [#allocation6], 0
    %12 = vsyncpa [#allocation4], 0
    %s13 = scalar_lea.sflag [#allocation4], 1
    %14 = vsyncpa %s13, 0
    loop: start=0, step=1, limit=4
    $region2: #{tpu_custom_call.1} parent=1 // loop_pre_header
      _
    $region3: #{tpu_custom_call.1} parent=1 // loop_header
      %s16 = sphi 0, %s20
      %p17 = scmp.ge.s32.totalorder %s16, 4
      %s23 = sphi 0, %s35
      %s24 = sphi 0, %s31
      %s25 = sphi 0, %s23
      %s26 = sphi 0, %s24
      %s27 = sphi 0, %s25
      %s28 = sphi 0, %s26
      %s40 = sphi 0, %s42
      %s43 = sphi 0, %s40
      %s44 = sphi 0, %s43
      %s60 = sphi 0, %s44
      %s64 = sphi 0, %s64
      %s66 = sphi 0, %s64
      %s67 = sphi 0, %s66
      %s81 = sphi 0, %s67
      %s85 = sphi 0, %s85
      %s87 = sphi 0, %s85
      %s88 = sphi 0, %s87
      %s102 = sphi 0, %s88
      %s108 = sphi 0, %s110
      %s111 = sphi 0, %s108
      %s112 = sphi 0, %s111
      %s128 = sphi 0, %s112
    $region4: #{tpu_custom_call.1} parent=1 // loop_header_branch
      %19 = sbr.rel (%p17) target = $region8
    $region5: #{tpu_custom_call.1} parent=1 // loop_body
      %s21 = ssub.s32 %s16, 1
      %s22 = ssub.s32 %s16, 2
      %s29 = sadd.s32 1, %s24
      %p30 = scmp.ge.s32.totalorder %s29, 1
      %s31 = scalar_select %p30, 0, %s29
      %s32 = sadd.s32 1, %s23
      %s33 = scalar_select %p30, %s32, %s23
      %p34 = scmp.ge.s32.totalorder %s33, 2
      %s35 = scalar_select %p34, 0, %s33
      %s36 = ssub.s32 %s23, %s35
      %s37 = ssub.s32 %s24, %s31
      %s38 = sor.u32 %s36, %s37
      %p39 = scmp.eq.s32.totalorder %s38, 0
      %s41 = sadd.s32 %s40, 1
      %s42 = scalar_select %p39, %s40, %s41
      %p45 = pneg %p39
      %p46 = scmp.eq.s32.totalorder %s16, 1
      %p47 = por %p45, %p46
      %p48 = scmp.ne.s32.totalorder %s40, %s43
      %p49 = scmp.eq.s32.totalorder %s16, 0
      %p50 = por %p48, %p49
      %p51 = scmp.ne.s32.totalorder %s40, %s43
      %p52 = scmp.eq.s32.totalorder %s21, 1
      %p53 = por %p51, %p52
      %p54 = scmp.ne.s32.totalorder %s43, %s44
      %p55 = scmp.eq.s32.totalorder %s21, 0
      %p56 = por %p54, %p55
      %p57 = scmp.ne.s32.totalorder %s43, %s44
      %p58 = scmp.eq.s32.totalorder %s22, 1
      %p59 = por %p57, %p58
      %p61 = scmp.ne.s32.totalorder %s44, %s60
      %p62 = scmp.eq.s32.totalorder %s22, 0
      %p63 = por %p61, %p62
      %s65 = sadd.s32 %s64, 1
      %p68 = scmp.eq.s32.totalorder %s16, 1
      %p69 = scmp.ne.s32.totalorder %s64, %s66
      %p70 = scmp.eq.s32.totalorder %s16, 0
      %p71 = por %p69, %p70
      %p72 = scmp.ne.s32.totalorder %s64, %s66
      %p73 = scmp.eq.s32.totalorder %s21, 1
      %p74 = por %p72, %p73
      %p75 = scmp.ne.s32.totalorder %s66, %s67
      %p76 = scmp.eq.s32.totalorder %s21, 0
      %p77 = por %p75, %p76
      %p78 = scmp.ne.s32.totalorder %s66, %s67
      %p79 = scmp.eq.s32.totalorder %s22, 1
      %p80 = por %p78, %p79
      %p82 = scmp.ne.s32.totalorder %s67, %s81
      %p83 = scmp.eq.s32.totalorder %s22, 0
      %p84 = por %p82, %p83
      %s86 = sadd.s32 %s85, 1
      %p89 = scmp.eq.s32.totalorder %s16, 1
      %p90 = scmp.ne.s32.totalorder %s85, %s87
      %p91 = scmp.eq.s32.totalorder %s16, 0
      %p92 = por %p90, %p91
      %p93 = scmp.ne.s32.totalorder %s85, %s87
      %p94 = scmp.eq.s32.totalorder %s21, 1
      %p95 = por %p93, %p94
      %p96 = scmp.ne.s32.totalorder %s87, %s88
      %p97 = scmp.eq.s32.totalorder %s21, 0
      %p98 = por %p96, %p97
      %p99 = scmp.ne.s32.totalorder %s87, %s88
      %p100 = scmp.eq.s32.totalorder %s22, 1
      %p101 = por %p99, %p100
      %p103 = scmp.ne.s32.totalorder %s88, %s102
      %p104 = scmp.eq.s32.totalorder %s22, 0
      %p105 = por %p103, %p104
      %s106 = ssub.s32 %s23, %s35
      %p107 = scmp.eq.s32.totalorder %s106, 0
      %s109 = sadd.s32 %s108, 1
      %s110 = scalar_select %p107, %s108, %s109
      %p113 = pneg %p107
      %p114 = scmp.eq.s32.totalorder %s16, 1
      %p115 = por %p113, %p114
      %p116 = scmp.ne.s32.totalorder %s108, %s111
      %p117 = scmp.eq.s32.totalorder %s16, 0
      %p118 = por %p116, %p117
      %p119 = scmp.ne.s32.totalorder %s108, %s111
      %p120 = scmp.eq.s32.totalorder %s21, 1
      %p121 = por %p119, %p120
      %p122 = scmp.ne.s32.totalorder %s111, %s112
      %p123 = scmp.eq.s32.totalorder %s21, 0
      %p124 = por %p122, %p123
      %p125 = scmp.ne.s32.totalorder %s111, %s112
      %p126 = scmp.eq.s32.totalorder %s22, 1
      %p127 = por %p125, %p126
      %p129 = scmp.ne.s32.totalorder %s112, %s128
      %p130 = scmp.eq.s32.totalorder %s22, 0
      %p131 = por %p129, %p130
      %p132 = scmp.le.s32.totalorder 1, %s16
      %p133 = scmp.lt.s32.totalorder %s16, 3
      %p134 = pnand %p132, %p133
      %p135 = pneg %p134
      // Predicated region
      $region9: #{tpu_custom_call.1} parent=5 // pred_check
        _
      $region10: #{tpu_custom_call.1} parent=5 // pred_check_branch
        %137 = sbr.rel (%p134) target = $region12
      $region11: #{tpu_custom_call.1} parent=5 // pred_region
        %s138 = ssub.s32 %s16, 1
        // Predicated region
        $region13: #{tpu_custom_call.1} parent=11 // pred_check
          %p139 = pneg %p77
        $region14: #{tpu_custom_call.1} parent=11 // pred_check_branch
          %141 = sbr.rel (%p139) target = $region16
        $region15: #{tpu_custom_call.1} parent=11 // pred_region
          %s143 = ssub.s32 512, 512
          %144 = vsyncadd [#allocation6], %s143
          %s145 = sshll.u32 [#allocation5], 4
          %s146 = int_to_ptr.vmem [resolvable:$true] %s145
          %151 = dma.hbm_to_vmem [thread:$0]  %s1, 512, %s146, [#allocation6], 128, 128, 8
        $region16: #{tpu_custom_call.1} parent=11 // pred_fallthru
          _
        // Predicated region
        $region17: #{tpu_custom_call.1} parent=11 // pred_check
          %p152 = pneg %p98
        $region18: #{tpu_custom_call.1} parent=11 // pred_check_branch
          %154 = sbr.rel (%p152) target = $region20
        $region19: #{tpu_custom_call.1} parent=11 // pred_region
          _
        $region20: #{tpu_custom_call.1} parent=11 // pred_fallthru
          _
      $region12: #{tpu_custom_call.1} parent=5 // pred_fallthru
        _
      %p155 = scmp.lt.s32.totalorder %s16, 2
      // Predicated region
      $region21: #{tpu_custom_call.1} parent=5 // pred_check
        %p156 = pneg %p155
      $region22: #{tpu_custom_call.1} parent=5 // pred_check_branch
        %158 = sbr.rel (%p156) target = $region24
      $region23: #{tpu_custom_call.1} parent=5 // pred_region
        // Predicated region
        $region25: #{tpu_custom_call.1} parent=23 // pred_check
          %p159 = pneg %p50
        $region26: #{tpu_custom_call.1} parent=23 // pred_check_branch
          %161 = sbr.rel (%p159) target = $region28
        $region27: #{tpu_custom_call.1} parent=23 // pred_region
          %s162 = sand.u32 %s40, 1
          %s163 = scalar_lea.sflag [#allocation3], %s162
          %s164 = sand.u32 %s40, 1
          %s165 = smul.addr %s164, 8
          %s166 = scalar_lea.vmem [#allocation2], %s165
          %s168 = ssub.s32 128, 128
          %169 = vsyncadd %s163, %s168
          %s170 = sadd.s32 %s24, %s23
          %s171 = smul.addr %s170, 128
          %s172 = scalar_lea.hbm %s0, %s171
          %s174 = sshll.u32 %s166, 4
          %s175 = int_to_ptr.vmem [resolvable:$true] %s174
          %177 = dma.hbm_to_vmem [thread:$0]  %s172, 128, %s175, %s163
        $region28: #{tpu_custom_call.1} parent=23 // pred_fallthru
          _
      $region24: #{tpu_custom_call.1} parent=5 // pred_fallthru
        _
      %p178 = scmp.le.s32.totalorder 1, %s16
      %p179 = scmp.lt.s32.totalorder %s16, 3
      %p180 = pnand %p178, %p179
      %p181 = pneg %p180
      // Predicated region
      $region29: #{tpu_custom_call.1} parent=5 // pred_check
        _
      $region30: #{tpu_custom_call.1} parent=5 // pred_check_branch
        %183 = sbr.rel (%p180) target = $region32
      $region31: #{tpu_custom_call.1} parent=5 // pred_region
        %s184 = ssub.s32 %s16, 1
        %s185 = sand.u32 %s43, 1
        %s186 = scalar_lea.sflag [#allocation3], %s185
        %s187 = sand.u32 %s43, 1
        %s188 = smul.addr %s187, 8
        %s189 = scalar_lea.vmem [#allocation2], %s188
        // Predicated region
        $region33: #{tpu_custom_call.1} parent=31 // pred_check
          %p190 = pneg %p56
        $region34: #{tpu_custom_call.1} parent=31 // pred_check_branch
          %192 = sbr.rel (%p190) target = $region36
        $region35: #{tpu_custom_call.1} parent=31 // pred_region
          %193 = dma.done %s186, 128
        $region36: #{tpu_custom_call.1} parent=31 // pred_fallthru
          _
        // Predicated region
        $region37: #{tpu_custom_call.1} parent=31 // pred_check
          %p194 = pneg %p77
        $region38: #{tpu_custom_call.1} parent=31 // pred_check_branch
          %196 = sbr.rel (%p194) target = $region40
        $region39: #{tpu_custom_call.1} parent=31 // pred_region
          %197 = dma.done [#allocation6], 512
        $region40: #{tpu_custom_call.1} parent=31 // pred_fallthru
          _
        %s198 = sand.u32 %s43, 1
        %s199 = scalar_lea.sflag [#allocation3], %s198
        %s200 = sand.u32 %s43, 1
        %s201 = smul.addr %s200, 8
        %s202 = scalar_lea.vmem [#allocation2], %s201
        %p203 = pneg %p56
        %p204 = pneg %p53
        %p205 = pneg %p77
        %p206 = pneg %p74
        %p207 = pneg %p98
        %p208 = pneg %p95
        %p209 = pneg %p124
        %p210 = pneg %p121
        %s211 = sand.u32 %s111, 1
        %s212 = scalar_lea.sflag [#allocation4], %s211
        %s213 = sand.u32 %s111, 1
        %s214 = smul.addr %s213, 8
        %s215 = scalar_lea.vmem [#allocation7], %s214
        %v216 = vld [vmem:[%s189] sm:$0xff]
        %v217 = vld [vmem:[#allocation5] sm:$0xff]
        %v218 = vld [vmem:[#allocation5 + $0x8] sm:$0xff]
        %v219 = vld [vmem:[#allocation5 + $0x10] sm:$0xff]
        %v220 = vld [vmem:[#allocation5 + $0x18] sm:$0xff]
        %v221 = vld [vmem:[%s2] sm:$0x7]
        %v222 = vlaneseq
        %v223 = vshrl.u32 %v222, 7
        %v224 = vsub.s32 0, %v223
        %v225 = vrot.slane %v221, %v224
        %vm226 = vcmask 261120
        %v228 = vsel %vm226, %v216, 0
        %230 = vmatprep.subr.mxu0 0.0
        %231 = vmatpush1.msra.mxu0 %v217
        %232 = vmatprep.subr.mxu0 0.0
        %233 = vmatpush1.msra.mxu0 %v218
        %234 = vmatprep.subr.mxu0 0.0
        %235 = vmatpush1.msra.mxu0 %v219
        %236 = vmatprep.subr.mxu0 0.0
        %237 = vmatpush1.msra.mxu0 %v220
        %238 = vmatprep.subr.mxu0 0.0
        %239 = vmatpush1.msra.mxu0 0.0
        %240 = vmatprep.subr.mxu0 0.0
        %241 = vmatpush1.msra.mxu0 0.0
        %242 = vmatprep.subr.mxu0 0.0
        %243 = vmatpush1.msra.mxu0 0.0
        %244 = vmatprep.subr.mxu0 0.0
        %245 = vmatpush1.msra.mxu0 0.0
        %246 = vmatprep.subr.mxu0 0.0
        %247 = vmatpush1.msra.mxu0 0.0
        %248 = vmatprep.subr.mxu0 0.0
        %249 = vmatpush1.msra.mxu0 0.0
        %250 = vmatprep.subr.mxu0 0.0
        %251 = vmatpush1.msra.mxu0 0.0
        %252 = vmatprep.subr.mxu0 0.0
        %253 = vmatpush1.msra.mxu0 0.0
        %254 = vmatprep.subr.mxu0 0.0
        %255 = vmatpush1.msra.mxu0 0.0
        %256 = vmatprep.subr.mxu0 0.0
        %257 = vmatpush1.msra.mxu0 0.0
        %258 = vmatprep.subr.mxu0 0.0
        %259 = vmatpush1.msra.mxu0 0.0
        %260 = vmatprep.subr.mxu0 0.0
        %261 = vmatpush1.msra.mxu0 0.0
        %262 = vmatprep.subr.mxu0 0.0
        %263 = vmatpush1.msra.mxu0 0.0
        %264 = vmatprep.subr.mxu0 0.0
        %265 = vmatpush1.msra.mxu0 0.0
        %266 = vmatprep.subr.mxu0 0.0
        %267 = vmatpush1.msra.mxu0 0.0
        %268 = vmatprep.subr.mxu0 0.0
        %269 = vmatpush1.msra.mxu0 0.0
        %270 = vmatprep.subr.mxu0 0.0
        %271 = vmatpush1.msra.mxu0 0.0
        %272 = vmatprep.subr.mxu0 0.0
        %273 = vmatpush1.msra.mxu0 0.0
        %274 = vmatprep.subr.mxu0 0.0
        %275 = vmatpush1.msra.mxu0 0.0
        %276 = vmatprep.subr.mxu0 0.0
        %277 = vmatpush1.msra.mxu0 0.0
        %278 = vmatprep.subr.mxu0 0.0
        %279 = vmatpush1.msra.mxu0 0.0
        %280 = vmatprep.subr.mxu0 0.0
        %281 = vmatpush1.msra.mxu0 0.0
        %282 = vmatprep.subr.mxu0 0.0
        %283 = vmatpush1.msra.mxu0 0.0
        %284 = vmatprep.subr.mxu0 0.0
        %285 = vmatpush1.msra.mxu0 0.0
        %286 = vmatprep.subr.mxu0 0.0
        %287 = vmatpush1.msra.mxu0 0.0
        %288 = vmatprep.subr.mxu0 0.0
        %289 = vmatpush1.msra.mxu0 0.0
        %290 = vmatprep.subr.mxu0 0.0
        %291 = vmatpush1.msra.mxu0 0.0
        %292 = vmatprep.subr.mxu0 0.0
        %293 = vmatpush1.msra.mxu0 0.0
        %294 = vmatprep.mubr.f32.mxu0 0.0
        %295 = vmatmul.mubr.f32.gmra.mrb[0].mxu0 %v228
        %v296 = vpop.f32.mrb[0].mxu0
        %v297 = vadd.f32 %v225, %v296
        %v298 = vpop.f32.mrb[0].mxu0
        %299 = vdwg.mxu0
        %vm300 = vcmp.gt.f32.partialorder %v297, 0.0
        %v301 = vmul.f32 %v297, 0.01
        %v302 = vsel %vm300, %v297, %v301
        %303 = vst [vmem:[%s215] sm:$0xff] %v302
        %s304 = sand.u32 %s111, 1
        %s305 = scalar_lea.sflag [#allocation4], %s304
        %s306 = sand.u32 %s111, 1
        %s307 = smul.addr %s306, 8
        %s308 = scalar_lea.vmem [#allocation7], %s307
        // Predicated region
        $region41: #{tpu_custom_call.1} parent=31 // pred_check
          %p309 = pneg %p121
        $region42: #{tpu_custom_call.1} parent=31 // pred_check_branch
          %311 = sbr.rel (%p309) target = $region44
        $region43: #{tpu_custom_call.1} parent=31 // pred_region
          %s313 = ssub.s32 128, 128
          %314 = vsyncadd %s305, %s313
          %s315 = smul.addr %s25, 128
          %s316 = scalar_lea.hbm %s3, %s315
          %s318 = sshll.u32 %s308, 4
          %s319 = int_to_ptr.vmem [resolvable:$true] %s318
          %321 = dma.vmem_to_hbm [thread:$0]  %s319, 128, %s316, %s305
        $region44: #{tpu_custom_call.1} parent=31 // pred_fallthru
          _
      $region32: #{tpu_custom_call.1} parent=5 // pred_fallthru
        _
      %p322 = scmp.le.s32.totalorder 2, %s16
      // Predicated region
      $region45: #{tpu_custom_call.1} parent=5 // pred_check
        %p323 = pneg %p322
      $region46: #{tpu_custom_call.1} parent=5 // pred_check_branch
        %325 = sbr.rel (%p323) target = $region48
      $region47: #{tpu_custom_call.1} parent=5 // pred_region
        %s326 = ssub.s32 %s16, 2
        // Predicated region
        $region49: #{tpu_custom_call.1} parent=47 // pred_check
          %p327 = pneg %p127
        $region50: #{tpu_custom_call.1} parent=47 // pred_check_branch
          %329 = sbr.rel (%p327) target = $region52
        $region51: #{tpu_custom_call.1} parent=47 // pred_region
          %s330 = sand.u32 %s112, 1
          %s331 = scalar_lea.sflag [#allocation4], %s330
          %s332 = sand.u32 %s112, 1
          %s333 = smul.addr %s332, 8
          %s334 = scalar_lea.vmem [#allocation7], %s333
          %335 = dma.done %s331, 128
        $region52: #{tpu_custom_call.1} parent=47 // pred_fallthru
          _
      $region48: #{tpu_custom_call.1} parent=5 // pred_fallthru
        _
    $region6: #{tpu_custom_call.1} parent=1 // loop_footer
      %s20 = sadd.s32 1, %s16
    $region7: #{tpu_custom_call.1} parent=1 // loop_footer_branch
      %15 = sbr.rel target = $region3
    $region8: #{tpu_custom_call.1} parent=1 // loop_exit
      _
    %336 = vsyncpa [#allocation3], 1
    %s337 = scalar_lea.sflag [#allocation3], 1
    %338 = vsyncpa %s337, 1
    %339 = vsyncpa [#allocation6], 1
    %340 = vsyncpa [#allocation4], 1
    %s341 = scalar_lea.sflag [#allocation4], 1
    %342 = vsyncpa %s341, 1

</llo_original>
